<compile_context>
chip_gen: v6e
topology: v6e:2x2x1
jax: 0.10.0
libtpu: 0.0.40
codegen_flags: <defaults>
</compile_context>

<pallas_src>
import jax
import jax.numpy as jnp
from jax.experimental import pallas as pl
from jax.experimental.pallas import tpu as pltpu


# --------------------------------------------------------------------------
# Fused fc1 + ReLU + (eval) dropout + fc2 + softmax kernel
# --------------------------------------------------------------------------
def _classifier_kernel(x_ref, w1_ref, b1_ref, w2_ref, b2_ref, o_ref):
    # x_ref : (TB, F)      batch tile of flattened features
    # w1_ref: (F, H)       fc1 weight, stored (in, out)
    # b1_ref: (1, H)       fc1 bias
    # w2_ref: (H, C)       fc2 weight, stored (in, out)
    # b2_ref: (1, C)       fc2 bias
    # o_ref : (TB, C)      softmax probabilities
    x = x_ref[...]

    # fc1 + ReLU (MXU matmul, f32 accumulation; epilogue on the VPU)
    h = jnp.dot(x, w1_ref[...], preferred_element_type=jnp.float32) + b1_ref[...]
    h = jnp.maximum(h, 0.0)

    # dropout3: identity in eval mode.

    # fc2
    logits = jnp.dot(h, w2_ref[...], preferred_element_type=jnp.float32) + b2_ref[...]

    # softmax over the class axis (dim=1)
    m = jnp.max(logits, axis=-1, keepdims=True)
    e = jnp.exp(logits - m)
    s = jnp.sum(e, axis=-1, keepdims=True)
    o_ref[...] = (e / s).astype(o_ref.dtype)


def classifier_forward(x, params):
    """x: (B, flattened_size) float32 -> (B, class_count) softmax probs."""
    B, F = x.shape
    H = params["w1"].shape[1]
    C = params["w2"].shape[1]

    # Batch tiling: whole batch in one tile when small (block == full array,
    # satisfies TPU tiling rules); otherwise 128-row tiles (multiple of 8).
    if B <= 128:
        TB, Bp = B, B
        xp = x
    else:
        TB = 128
        Bp = pl.cdiv(B, TB) * TB
        xp = jnp.pad(x, ((0, Bp - B), (0, 0)))

    out = pl.pallas_call(
        _classifier_kernel,
        out_shape=jax.ShapeDtypeStruct((Bp, C), jnp.float32),
        grid=(Bp // TB,),
        in_specs=[
            pl.BlockSpec((TB, F), lambda b: (b, 0)),
            pl.BlockSpec((F, H), lambda b: (0, 0)),
            pl.BlockSpec((1, H), lambda b: (0, 0)),
            pl.BlockSpec((H, C), lambda b: (0, 0)),
            pl.BlockSpec((1, C), lambda b: (0, 0)),
        ],
        out_specs=pl.BlockSpec((TB, C), lambda b: (b, 0)),
        compiler_params=pltpu.CompilerParams(
            dimension_semantics=("parallel",)),
    )(
        xp,
        params["w1"],
        params["b1"].reshape(1, H),
        params["w2"],
        params["b2"].reshape(1, C),
    )
    return out[:B]


forward = jax.jit(classifier_forward)


# --------------------------------------------------------------------------
# Parameters (mirrors Classifier._initialize_weights for nn.Linear:
#   weight ~ U(-0.1, 0.1), bias = 0)
# --------------------------------------------------------------------------
def init_params(key, flattened_size, class_count, hidden=100):
    k1, k2 = jax.random.split(key)
    # Stored as (in_features, out_features) == torch weight (out, in) transposed.
    w1 = jax.random.uniform(k1, (flattened_size, hidden), jnp.float32, -0.1, 0.1)
    w2 = jax.random.uniform(k2, (hidden, class_count), jnp.float32, -0.1, 0.1)
    return dict(
        w1=w1, b1=jnp.zeros((hidden,), jnp.float32),
        w2=w2, b2=jnp.zeros((class_count,), jnp.float32),
    )


# --------------------------------------------------------------------------
# Pure-JAX reference (for correctness check only)
# --------------------------------------------------------------------------
def ref_forward(x, params):
    h = jax.nn.relu(x @ params["w1"] + params["b1"])
    # dropout: identity (eval)
    logits = h @ params["w2"] + params["b2"]
    return jax.nn.softmax(logits, axis=1)


if __name__ == "__main__":
    key = jax.random.PRNGKey(0)
    kx, kp = jax.random.split(key)

    # Small shapes consistent with the module: the DCASE baseline front-end
    # (20 mel bins x 500 frames, two conv+pool stages) flattens to 64 features;
    # hidden size is fixed at 100 by the module; pick 10 classes.
    B, FLAT, CLASSES = 2, 64, 10
    x = jax.random.normal(kx, (B, FLAT), jnp.float32)
    params = init_params(kp, FLAT, CLASSES)

    out = forward(x, params)
    out = jax.block_until_ready(out)

    ref = ref_forward(x, params)
    assert out.shape == ref.shape == (B, CLASSES), (out.shape, ref.shape)
    max_err = float(jnp.max(jnp.abs(out - ref)))
    assert jnp.allclose(out, ref, rtol=1e-4, atol=1e-4), max_err
    # softmax rows must sum to 1
    assert jnp.allclose(jnp.sum(out, axis=1), 1.0, atol=1e-4)

    print("KERNEL_OK")
</pallas_src>

<mosaic_0001>
module attributes {stable_mosaic.version = 11 : i64} {
  func.func @_classifier_kernel(%arg0: i32, %arg1: memref<2x64xf32, #tpu.memory_space<vmem>>, %arg2: memref<64x100xf32, #tpu.memory_space<vmem>>, %arg3: memref<1x100xf32, #tpu.memory_space<vmem>>, %arg4: memref<100x10xf32, #tpu.memory_space<vmem>>, %arg5: memref<1x10xf32, #tpu.memory_space<vmem>>, %arg6: memref<2x10xf32, #tpu.memory_space<vmem>>) attributes {dimension_semantics = [#tpu.dimension_semantics<parallel>], iteration_bounds = array<i64: 1>, scalar_prefetch = 0 : i64, scratch_operands = 0 : i64, tpu.core_type = #tpu.core_type<tc>, window_params = [{transform_indices = @transform_0, window_bounds = array<i64: 2, 64>}, {pipeline_mode = #tpu.pipeline_mode<synchronous>, transform_indices = @transform_1, window_bounds = array<i64: 64, 100>}, {pipeline_mode = #tpu.pipeline_mode<synchronous>, transform_indices = @transform_2, window_bounds = array<i64: 1, 100>}, {pipeline_mode = #tpu.pipeline_mode<synchronous>, transform_indices = @transform_3, window_bounds = array<i64: 100, 10>}, {pipeline_mode = #tpu.pipeline_mode<synchronous>, transform_indices = @transform_4, window_bounds = array<i64: 1, 10>}, {transform_indices = @transform_5, window_bounds = array<i64: 2, 10>}]} {
    %c0 = arith.constant 0 : index
    %c0_0 = arith.constant 0 : index
    %0 = vector.load %arg1[%c0, %c0_0] : memref<2x64xf32, #tpu.memory_space<vmem>>, vector<2x64xf32>
    %c0_1 = arith.constant 0 : index
    %c0_2 = arith.constant 0 : index
    %1 = vector.load %arg2[%c0_1, %c0_2] : memref<64x100xf32, #tpu.memory_space<vmem>>, vector<64x100xf32>
    %cst = arith.constant dense<0.000000e+00> : vector<2x100xf32>
    %2 = tpu.matmul %0, %1, %cst {dimension_numbers = #tpu.dot_dimension_numbers<[1], [0], [0], [1], [0, 0, 1, 1], [], []>} : vector<2x64xf32>, vector<64x100xf32>, vector<2x100xf32> -> vector<2x100xf32>
    %c0_3 = arith.constant 0 : index
    %c0_4 = arith.constant 0 : index
    %3 = vector.load %arg3[%c0_3, %c0_4] : memref<1x100xf32, #tpu.memory_space<vmem>>, vector<1x100xf32>
    %4 = vector.broadcast %3 : vector<1x100xf32> to vector<2x100xf32>
    %5 = arith.addf %2, %4 : vector<2x100xf32>
    %cst_5 = arith.constant 0.000000e+00 : f32
    %6 = vector.broadcast %cst_5 : f32 to vector<2x100xf32>
    %7 = arith.maximumf %5, %6 : vector<2x100xf32>
    %c0_6 = arith.constant 0 : index
    %c0_7 = arith.constant 0 : index
    %8 = vector.load %arg4[%c0_6, %c0_7] : memref<100x10xf32, #tpu.memory_space<vmem>>, vector<100x10xf32>
    %cst_8 = arith.constant dense<0.000000e+00> : vector<2x10xf32>
    %9 = tpu.matmul %7, %8, %cst_8 {dimension_numbers = #tpu.dot_dimension_numbers<[1], [0], [0], [1], [0, 0, 1, 1], [], []>} : vector<2x100xf32>, vector<100x10xf32>, vector<2x10xf32> -> vector<2x10xf32>
    %c0_9 = arith.constant 0 : index
    %c0_10 = arith.constant 0 : index
    %10 = vector.load %arg5[%c0_9, %c0_10] : memref<1x10xf32, #tpu.memory_space<vmem>>, vector<1x10xf32>
    %11 = vector.broadcast %10 : vector<1x10xf32> to vector<2x10xf32>
    %12 = arith.addf %9, %11 : vector<2x10xf32>
    %cst_11 = arith.constant dense<0xFF800000> : vector<2xf32>
    %13 = vector.multi_reduction <maximumf>, %12, %cst_11 [1] : vector<2x10xf32> to vector<2xf32>
    %14 = vector.shape_cast %13 : vector<2xf32> to vector<2x1xf32>
    %15 = vector.broadcast %14 : vector<2x1xf32> to vector<2x10xf32>
    %16 = arith.subf %12, %15 : vector<2x10xf32>
    %17 = math.exp %16 : vector<2x10xf32>
    %cst_12 = arith.constant dense<0.000000e+00> : vector<2xf32>
    %18 = vector.multi_reduction <add>, %17, %cst_12 [1] : vector<2x10xf32> to vector<2xf32>
    %19 = vector.shape_cast %18 : vector<2xf32> to vector<2x1xf32>
    %20 = vector.broadcast %19 : vector<2x1xf32> to vector<2x10xf32>
    %21 = arith.divf %17, %20 : vector<2x10xf32>
    %c0_13 = arith.constant 0 : index
    %c0_14 = arith.constant 0 : index
    %22 = vector.load %arg6[%c0_13, %c0_14] : memref<2x10xf32, #tpu.memory_space<vmem>>, vector<2x10xf32>
    tpu.vector_store %arg6[%c0_13, %c0_14], %21 {strides = array<i32>} : memref<2x10xf32, #tpu.memory_space<vmem>>, vector<2x10xf32>,
    return
  }
  func.func @transform_0(%arg0: i32) -> (i32, i32) {
    %c0_i32 = arith.constant 0 : i32
    %c0_i32_0 = arith.constant 0 : i32
    return %arg0, %c0_i32 : i32, i32
  }
  func.func @transform_1(%arg0: i32) -> (i32, i32) {
    %c0_i32 = arith.constant 0 : i32
    %c0_i32_0 = arith.constant 0 : i32
    %c0_i32_1 = arith.constant 0 : i32
    return %c0_i32, %c0_i32_0 : i32, i32
  }
  func.func @transform_2(%arg0: i32) -> (i32, i32) {
    %c0_i32 = arith.constant 0 : i32
    %c0_i32_0 = arith.constant 0 : i32
    %c0_i32_1 = arith.constant 0 : i32
    return %c0_i32, %c0_i32_0 : i32, i32
  }
  func.func @transform_3(%arg0: i32) -> (i32, i32) {
    %c0_i32 = arith.constant 0 : i32
    %c0_i32_0 = arith.constant 0 : i32
    %c0_i32_1 = arith.constant 0 : i32
    return %c0_i32, %c0_i32_0 : i32, i32
  }
  func.func @transform_4(%arg0: i32) -> (i32, i32) {
    %c0_i32 = arith.constant 0 : i32
    %c0_i32_0 = arith.constant 0 : i32
    %c0_i32_1 = arith.constant 0 : i32
    return %c0_i32, %c0_i32_0 : i32, i32
  }
  func.func @transform_5(%arg0: i32) -> (i32, i32) {
    %c0_i32 = arith.constant 0 : i32
    %c0_i32_0 = arith.constant 0 : i32
    return %arg0, %c0_i32 : i32, i32
  }
}

</mosaic_0001>

<llo_original>
// kernel: classifier_forward.1
$region0: #{classifier_forward.1}
  #allocation0 [shape = 'u32[]', space=smem, size = 0x4, offset = 0x4, fixed_abs, tag = 'smem constant byte address 0x4 - core index']
  #allocation1 [shape = 'u32[144,128]{1,0:T(1,128)}', space=vmem, size = 0x12000, scoped, tag = 'internal scratch']
  %s0 = inlined_call_operand.vmem [shape: f32[2,64], index: 0, kind: input, shape index: {}]
  %s1 = inlined_call_operand.vmem [shape: f32[64,100], index: 1, kind: input, shape index: {}]
  %s2 = inlined_call_operand.vmem [shape: f32[1,100], index: 2, kind: input, shape index: {}]
  %s3 = inlined_call_operand.vmem [shape: f32[100,10], index: 3, kind: input, shape index: {}]
  %s4 = inlined_call_operand.vmem [shape: f32[1,10], index: 4, kind: input, shape index: {}]
  %s5 = inlined_call_operand.hbm [shape: f32[2,10], index: 5, kind: output, shape index: {}]
  %s6 = sld [smem:[#allocation0]]
  $region30: #{classifier_forward.1} parent=0
    _
  %s8 = ssub.s32 1, %s6
  %s9 = scalar_select 0, %s8, %s6
  $region1: #{classifier_forward.1} parent=0
    #allocation2 [shape = 'u8[1024]{0}', space=vmem, size = 0x400, scoped, tag = 'output window, operand 0, single buffered']
    #allocation3 [shape = 's32[1]{0}', space=sflag, size = 0x4, scoped, tag = 'scoped memory for classifier_forward.1']
    %10 = vsyncpa [#allocation3], 0
    // Predicated region
    $region2: #{classifier_forward.1} parent=1 // pred_check
      _
    $region3: #{classifier_forward.1} parent=1 // pred_check_branch
      %12 = sbr.rel (0) target = $region5
    $region4: #{classifier_forward.1} parent=1 // pred_region
      _
    $region5: #{classifier_forward.1} parent=1 // pred_fallthru
      _
    // Predicated region
    $region6: #{classifier_forward.1} parent=1 // pred_check
      _
    $region7: #{classifier_forward.1} parent=1 // pred_check_branch
      %14 = sbr.rel (0) target = $region9
    $region8: #{classifier_forward.1} parent=1 // pred_region
      _
    $region9: #{classifier_forward.1} parent=1 // pred_fallthru
      _
    // Predicated region
    $region10: #{classifier_forward.1} parent=1 // pred_check
      _
    $region11: #{classifier_forward.1} parent=1 // pred_check_branch
      %16 = sbr.rel (0) target = $region13
    $region12: #{classifier_forward.1} parent=1 // pred_region
      _
    $region13: #{classifier_forward.1} parent=1 // pred_fallthru
      _
    // Predicated region
    $region14: #{classifier_forward.1} parent=1 // pred_check
      _
    $region15: #{classifier_forward.1} parent=1 // pred_check_branch
      %18 = sbr.rel (0) target = $region17
    $region16: #{classifier_forward.1} parent=1 // pred_region
      _
    $region17: #{classifier_forward.1} parent=1 // pred_fallthru
      _
    // Predicated region
    $region18: #{classifier_forward.1} parent=1 // pred_check
      _
    $region19: #{classifier_forward.1} parent=1 // pred_check_branch
      %20 = sbr.rel (0) target = $region21
    $region20: #{classifier_forward.1} parent=1 // pred_region
      _
    $region21: #{classifier_forward.1} parent=1 // pred_fallthru
      _
    %v21 = vld [vmem:[%s0] sm:$0x3]
    %v22 = vld [vmem:[%s1] sm:$0xff]
    %v23 = vld [vmem:[%s1 + $0x8] sm:$0xff]
    %v24 = vld [vmem:[%s1 + $0x10] sm:$0xff]
    %v25 = vld [vmem:[%s1 + $0x18] sm:$0xff]
    %v26 = vld [vmem:[%s1 + $0x20] sm:$0xff]
    %v27 = vld [vmem:[%s1 + $0x28] sm:$0xff]
    %v28 = vld [vmem:[%s1 + $0x30] sm:$0xff]
    %v29 = vld [vmem:[%s1 + $0x38] sm:$0xff]
    %v30 = vld [vmem:[%s2] sm:$0x1]
    %v32 = vlaneseq
    %v33 = vshrl.u32 %v32, 7
    %v34 = vsub.s32 0, %v33
    %v35 = vrot.slane %v30, %v34
    %vm37 = vcmask 523264
    %v39 = vsel %vm37, %v21, 0
    %41 = vmatprep.subr.mxu0 0.0
    %42 = vmatpush1.msra.mxu0 0.0
    %43 = vmatprep.subr.mxu0 0.0
    %44 = vmatpush1.msra.mxu0 0.0
    %45 = vmatprep.subr.mxu0 0.0
    %46 = vmatpush1.msra.mxu0 0.0
    %47 = vmatprep.subr.mxu0 0.0
    %48 = vmatpush1.msra.mxu0 0.0
    %49 = vmatprep.subr.mxu0 0.0
    %50 = vmatpush1.msra.mxu0 0.0
    %51 = vmatprep.subr.mxu0 0.0
    %52 = vmatpush1.msra.mxu0 0.0
    %53 = vmatprep.subr.mxu0 0.0
    %54 = vmatpush1.msra.mxu0 0.0
    %55 = vmatprep.subr.mxu0 0.0
    %56 = vmatpush1.msra.mxu0 0.0
    %57 = vmatprep.subr.mxu0 0.0
    %58 = vmatpush1.msra.mxu0 %v29
    %59 = vmatprep.subr.mxu0 0.0
    %60 = vmatpush1.msra.mxu0 %v28
    %61 = vmatprep.subr.mxu0 0.0
    %62 = vmatpush1.msra.mxu0 %v27
    %63 = vmatprep.subr.mxu0 0.0
    %64 = vmatpush1.msra.mxu0 %v26
    %65 = vmatprep.subr.mxu0 0.0
    %66 = vmatpush1.msra.mxu0 %v25
    %67 = vmatprep.subr.mxu0 0.0
    %68 = vmatpush1.msra.mxu0 %v24
    %69 = vmatprep.subr.mxu0 0.0
    %70 = vmatpush1.msra.mxu0 %v23
    %71 = vmatprep.subr.mxu0 0.0
    %72 = vmatpush1.msra.mxu0 %v22
    %73 = vmatprep.subr.mxu0 0.0
    %74 = vmatpush2.msra.mxu0 0.0
    %75 = vmatprep.subr.mxu0 0.0
    %76 = vmatpush2.msra.mxu0 0.0
    %77 = vmatprep.subr.mxu0 0.0
    %78 = vmatpush2.msra.mxu0 0.0
    %79 = vmatprep.subr.mxu0 0.0
    %80 = vmatpush2.msra.mxu0 0.0
    %81 = vmatprep.subr.mxu0 0.0
    %82 = vmatpush2.msra.mxu0 0.0
    %83 = vmatprep.subr.mxu0 0.0
    %84 = vmatpush2.msra.mxu0 0.0
    %85 = vmatprep.subr.mxu0 0.0
    %86 = vmatpush2.msra.mxu0 0.0
    %87 = vmatprep.subr.mxu0 0.0
    %88 = vmatpush2.msra.mxu0 0.0
    %89 = vmatprep.subr.mxu0 0.0
    %90 = vmatpush2.msra.mxu0 0.0
    %91 = vmatprep.subr.mxu0 0.0
    %92 = vmatpush2.msra.mxu0 0.0
    %93 = vmatprep.subr.mxu0 0.0
    %94 = vmatpush2.msra.mxu0 0.0
    %95 = vmatprep.subr.mxu0 0.0
    %96 = vmatpush2.msra.mxu0 0.0
    %97 = vmatprep.subr.mxu0 0.0
    %98 = vmatpush2.msra.mxu0 0.0
    %99 = vmatprep.subr.mxu0 0.0
    %100 = vmatpush2.msra.mxu0 0.0
    %101 = vmatprep.subr.mxu0 0.0
    %102 = vmatpush2.msra.mxu0 0.0
    %103 = vmatprep.subr.mxu0 0.0
    %104 = vmatpush2.msra.mxu0 0.0
    %105 = vmatprep.mubr.f32.mxu0 0.0
    %106 = vmatmul.mubr.f32.gmra.mxu0 %v39
    %v107 = vpop.f32.mrf.mxu0
    %v108 = vadd.f32 %v35, %v107
    %v109 = vpop.f32.mrf.mxu0
    %110 = vdwg.mxu0
    %v111 = vmax.f32 %v108, 0.0
    %v112 = vld [vmem:[%s3] sm:$0xff]
    %v113 = vld [vmem:[%s3 + $0x8] sm:$0xff]
    %v114 = vld [vmem:[%s3 + $0x10] sm:$0xff]
    %v115 = vld [vmem:[%s3 + $0x18] sm:$0xff]
    %v116 = vld [vmem:[%s3 + $0x20] sm:$0xff]
    %v117 = vld [vmem:[%s3 + $0x28] sm:$0xff]
    %v118 = vld [vmem:[%s3 + $0x30] sm:$0xff]
    %v119 = vld [vmem:[%s3 + $0x38] sm:$0xff]
    %v120 = vld [vmem:[%s3 + $0x40] sm:$0xff]
    %v121 = vld [vmem:[%s3 + $0x48] sm:$0xff]
    %v122 = vld [vmem:[%s3 + $0x50] sm:$0xff]
    %v123 = vld [vmem:[%s3 + $0x58] sm:$0xff]
    %v124 = vld [vmem:[%s3 + $0x60] sm:$0xf]
    %v125 = vld [vmem:[%s4] sm:$0x1]
    %v127 = vlaneseq
    %v128 = vshrl.u32 %v127, 7
    %v129 = vsub.s32 0, %v128
    %v130 = vrot.slane %v125, %v129
    %vm132 = vcmask 818176
    %v134 = vsel %vm132, %v111, 0
    %vm136 = vcmask 1043456
    %v138 = vsel %vm136, %v124, 0
    %140 = vmatprep.subr.mxu0 0.0
    %141 = vmatpush1.msra.mxu0 0.0
    %142 = vmatprep.subr.mxu0 0.0
    %143 = vmatpush1.msra.mxu0 0.0
    %144 = vmatprep.subr.mxu0 0.0
    %145 = vmatpush1.msra.mxu0 0.0
    %146 = vmatprep.subr.mxu0 0.0
    %147 = vmatpush1.msra.mxu0 %v138
    %148 = vmatprep.subr.mxu0 0.0
    %149 = vmatpush1.msra.mxu0 %v123
    %150 = vmatprep.subr.mxu0 0.0
    %151 = vmatpush1.msra.mxu0 %v122
    %152 = vmatprep.subr.mxu0 0.0
    %153 = vmatpush1.msra.mxu0 %v121
    %154 = vmatprep.subr.mxu0 0.0
    %155 = vmatpush1.msra.mxu0 %v120
    %156 = vmatprep.subr.mxu0 0.0
    %157 = vmatpush1.msra.mxu0 %v119
    %158 = vmatprep.subr.mxu0 0.0
    %159 = vmatpush1.msra.mxu0 %v118
    %160 = vmatprep.subr.mxu0 0.0
    %161 = vmatpush1.msra.mxu0 %v117
    %162 = vmatprep.subr.mxu0 0.0
    %163 = vmatpush1.msra.mxu0 %v116
    %164 = vmatprep.subr.mxu0 0.0
    %165 = vmatpush1.msra.mxu0 %v115
    %166 = vmatprep.subr.mxu0 0.0
    %167 = vmatpush1.msra.mxu0 %v114
    %168 = vmatprep.subr.mxu0 0.0
    %169 = vmatpush1.msra.mxu0 %v113
    %170 = vmatprep.subr.mxu0 0.0
    %171 = vmatpush1.msra.mxu0 %v112
    %172 = vmatprep.subr.mxu0 0.0
    %173 = vmatpush2.msra.mxu0 0.0
    %174 = vmatprep.subr.mxu0 0.0
    %175 = vmatpush2.msra.mxu0 0.0
    %176 = vmatprep.subr.mxu0 0.0
    %177 = vmatpush2.msra.mxu0 0.0
    %178 = vmatprep.subr.mxu0 0.0
    %179 = vmatpush2.msra.mxu0 0.0
    %180 = vmatprep.subr.mxu0 0.0
    %181 = vmatpush2.msra.mxu0 0.0
    %182 = vmatprep.subr.mxu0 0.0
    %183 = vmatpush2.msra.mxu0 0.0
    %184 = vmatprep.subr.mxu0 0.0
    %185 = vmatpush2.msra.mxu0 0.0
    %186 = vmatprep.subr.mxu0 0.0
    %187 = vmatpush2.msra.mxu0 0.0
    %188 = vmatprep.subr.mxu0 0.0
    %189 = vmatpush2.msra.mxu0 0.0
    %190 = vmatprep.subr.mxu0 0.0
    %191 = vmatpush2.msra.mxu0 0.0
    %192 = vmatprep.subr.mxu0 0.0
    %193 = vmatpush2.msra.mxu0 0.0
    %194 = vmatprep.subr.mxu0 0.0
    %195 = vmatpush2.msra.mxu0 0.0
    %196 = vmatprep.subr.mxu0 0.0
    %197 = vmatpush2.msra.mxu0 0.0
    %198 = vmatprep.subr.mxu0 0.0
    %199 = vmatpush2.msra.mxu0 0.0
    %200 = vmatprep.subr.mxu0 0.0
    %201 = vmatpush2.msra.mxu0 0.0
    %202 = vmatprep.subr.mxu0 0.0
    %203 = vmatpush2.msra.mxu0 0.0
    %204 = vmatprep.mubr.f32.mxu0 0.0
    %205 = vmatmul.mubr.f32.gmra.mxu0 %v134
    %v206 = vpop.f32.mrf.mxu0
    %v207 = vadd.f32 %v130, %v206
    %v208 = vpop.f32.mrf.mxu0
    %209 = vdwg.mxu0
    %vm210 = vcmask 74752
    %v211 = vsel %vm210, %v207, -inf
    %212 = vmax.xlane.f32.xlu0 %v211
    %v213 = vpop.xlane.xlu0 %212
    %v214 = vsub.f32 %v207, %v213
    %v215 = vmul.f32 %v214, 1.442695
    %v216 = vpow.pop %v215
    %v217 = vsel %vm210, %v216, 0.0
    %218 = vadd.xlane.f32.xlu0 %v217
    %v219 = vpop.xlane.xlu0 %218
    %v220 = vrcp.pop %v219
    %v221 = vmul.f32 %v216, %v220
    %222 = vst.msk [vmem:[#allocation2] sm:$0x3] %vm210, %v221
    // Predicated region
    $region22: #{classifier_forward.1} parent=1 // pred_check
      _
    $region23: #{classifier_forward.1} parent=1 // pred_check_branch
      %224 = sbr.rel (0) target = $region25
    $region24: #{classifier_forward.1} parent=1 // pred_region
      %s226 = ssub.s32 32, 32
      %227 = vsyncadd [#allocation3], %s226
      %s229 = sshll.u32 [#allocation2], 4
      %s230 = int_to_ptr.vmem [resolvable:$true] %s229
      %232 = dma.vmem_to_hbm [thread:$0]  %s230, 32, %s5, [#allocation3]
    $region25: #{classifier_forward.1} parent=1 // pred_fallthru
      _
    // Predicated region
    $region26: #{classifier_forward.1} parent=1 // pred_check
      _
    $region27: #{classifier_forward.1} parent=1 // pred_check_branch
      %234 = sbr.rel (0) target = $region29
    $region28: #{classifier_forward.1} parent=1 // pred_region
      %235 = dma.done [#allocation3], 32
    $region29: #{classifier_forward.1} parent=1 // pred_fallthru
      _
    %236 = vsyncpa [#allocation3], 1

</llo_original>
